<compile_context>
chip_gen: v6e
topology: v6e:2x2x1
jax: 0.10.0
libtpu: 0.0.40
codegen_flags: <defaults>
</compile_context>

<pallas_src>
import functools

import jax
import jax.numpy as jnp
from jax.experimental import pallas as pl
from jax.experimental.pallas import tpu as pltpu

# ----- hyperparameters (match the PyTorch __init__ defaults) ----------------
GAMMA_NEG = 4.0
GAMMA_POS = 0.0
CLIP = 0.05
EPS = 1e-8

_MIB = 1024 * 1024


# ----- parameter setup (glue, plain JAX): create_weight ---------------------
def create_weight(distribution: jnp.ndarray) -> jnp.ndarray:
    """weight = (-log(clamp(prob, eps)) + 1)^(1/6), prob normalized by max."""
    dist = distribution.astype(jnp.float32)
    prob = dist / dist.sum()
    prob = prob / (prob.max() + EPS)
    weight = jnp.power(-jnp.log(jnp.maximum(prob, EPS)) + 1.0, 1.0 / 6.0)
    return weight  # shape [C]


# TODO(synk): create_co_occurrence_matrix loads an .npy from disk and is not
# used in forward(); not translated.


# ----- Pallas kernel ---------------------------------------------------------
def _lane_fold(part):
    """(8, C) -> (8, 128): balanced-tree sum of 128-lane groups.

    The static 128-wide column slices are vreg-aligned views, so this is pure
    VALU adds with no lane crossing.  For C == 128 it is a no-op.
    """
    c = part.shape[-1]
    groups = [part[:, g * 128:(g + 1) * 128] for g in range(c // 128)]
    while len(groups) > 1:
        nxt = [a + b for a, b in zip(groups[0::2], groups[1::2])]
        if len(groups) % 2:
            nxt.append(groups[-1])
        groups = nxt
    return groups[0]


def _mfl_kernel(x_ref, y_ref, w_ref, g_ref, out_ref, *, true_rows):
    # grid = (n_split [parallel], n_inner [arbitrary]); the (8, 128) output
    # block is resident across the inner axis and acts as an accumulator.
    i = pl.program_id(1)

    @pl.when(i == 0)
    def _():
        out_ref[...] = jnp.zeros_like(out_ref)

    x = x_ref[...].astype(jnp.float32)   # (tb, C)
    y = y_ref[...].astype(jnp.float32)   # (tb, C)
    w = w_ref[...]                       # (1, C) f32, broadcasts over rows
    gneg_w = g_ref[...]                  # (1, C) f32 = GAMMA_NEG + weight

    # sigmoid via a single tanh (one EUP op instead of exp + reciprocal)
    x_sigmoid = 0.5 * (jnp.tanh(0.5 * x) + 1.0)
    xs_pos = x_sigmoid                                  # gamma_class_pos = 1
    xs_neg = jnp.minimum(1.0 - x_sigmoid + CLIP, 1.0)   # clip & clamp(max=1)

    los_pos = y * jnp.log(jnp.maximum(xs_pos, EPS))
    los_neg = (1.0 - y) * jnp.log(jnp.maximum(xs_neg, EPS))
    loss = (los_pos + los_neg) * w

    # asymmetric focal reweighting (no-grad branch in torch; fwd math identical)
    if GAMMA_NEG > 0 or GAMMA_POS > 0:
        pt = xs_pos * y + xs_neg * (1.0 - y)
        if GAMMA_POS != 0.0:
            one_sided_gamma = GAMMA_POS * y + gneg_w * (1.0 - y)
        else:
            # GAMMA_POS == 0 statically: drop the dead multiply/add
            one_sided_gamma = gneg_w * (1.0 - y)
        # pow(base, g) with a runtime fp exponent lowers to log+exp plus a pile
        # of special-case compares/selects; write exp(g*log(base)) directly.
        # The EPS clamp keeps g == 0 positives at exp(0) == 1 (== pow(x, 0)).
        log1mpt = jnp.log(jnp.maximum(1.0 - pt, EPS))
        loss = loss * jnp.exp(one_sided_gamma * log1mpt)

    tb, c = loss.shape

    if true_rows is not None:
        # Ragged batch: zero out padded rows (x=0,y=0 rows would otherwise
        # contribute log(0.55)*w*focal != 0).
        tile_idx = pl.program_id(0) * pl.num_programs(1) + i
        limit = true_rows - tile_idx * tb
        row_ids = jax.lax.broadcasted_iota(jnp.int32, (tb, c), 0)
        loss = jnp.where(row_ids < limit, loss, 0.0)

    # Fold batch rows into 8 sublanes (free reshape + cross-vreg VALU adds),
    # then fold 128-lane groups so the resident accumulator is only (8, 128).
    part = loss.reshape(tb // 8, 8, c).sum(axis=0)   # (8, C)
    out_ref[...] += _lane_fold(part)                 # (8, 128)


# ----- tiling / wrapper -------------------------------------------------------
@functools.lru_cache(maxsize=1)
def _vmem_capacity_bytes():
    try:
        return int(pltpu.get_tpu_info().vmem_capacity_bytes)
    except Exception:
        return 64 * _MIB  # conservative (v7x) fallback


def _round_up(n, m):
    return ((n + m - 1) // m) * m


def _pick_tiling(B, C, in_bytes_per_elem, tile_b):
    """Returns (tb, n_split, n_inner, padded_B, vmem_limit_bytes)."""
    vmem = _vmem_capacity_bytes()
    # Double-buffered x+y pipeline gets ~VMEM/4: ≈16 MiB on 64 MiB v7x,
    # ≈32 MiB on 128 MiB v5e/v6e  ->  multi-MiB blocks even for small C.
    pipeline_budget = max(4 * _MIB, vmem // 4)
    row_bytes = C * in_bytes_per_elem               # one row of x plus one of y
    max_rows = max(8, pipeline_budget // (2 * row_bytes))   # 2 pipeline buffers

    b8 = _round_up(B, 8)
    if tile_b is None:
        tb = min(max_rows, b8)
    else:
        tb = min(int(tile_b), max_rows, b8)
    tb = max(8, (tb // 8) * 8)

    n_tiles = pl.cdiv(B, tb)
    if n_tiles == 1 and B > 8:
        # Split the single tile so v7x's two TensorCores both get work.
        tb = max(8, ((B + 15) // 16) * 8)
        n_tiles = pl.cdiv(B, tb)
    n_split = 2 if n_tiles >= 2 else 1
    n_inner = pl.cdiv(n_tiles, n_split)
    padded_B = n_split * n_inner * tb

    used_inputs = 2 * tb * row_bytes                # 2 buffers x (x block + y block)
    vmem_limit = max(32 * _MIB, min(vmem * 3 // 4, used_inputs + 32 * _MIB))
    return tb, n_split, n_inner, padded_B, vmem_limit


@functools.partial(jax.jit, static_argnames=("tile_b",))
def multi_grained_focal_loss(x, y, weight, *, tile_b=None):
    B, C = x.shape
    assert C % 128 == 0, "require C % 128 == 0"
    # TODO(synk): pad + mask the class axis for C not a multiple of 128.

    in_bytes = x.dtype.itemsize + y.dtype.itemsize
    tb, n_split, n_inner, padded_B, vmem_limit = _pick_tiling(B, C, in_bytes, tile_b)

    if padded_B != B:
        # Zero-pad trailing rows; they are masked out inside the kernel.
        x = jnp.pad(x, ((0, padded_B - B), (0, 0)))
        y = jnp.pad(y, ((0, padded_B - B), (0, 0)))

    w2d = weight.reshape(1, C).astype(jnp.float32)
    g2d = (w2d + GAMMA_NEG).astype(jnp.float32)     # hoisted GAMMA_NEG + weight

    kernel = functools.partial(
        _mfl_kernel, true_rows=(B if padded_B != B else None))

    out = pl.pallas_call(
        kernel,
        out_shape=jax.ShapeDtypeStruct((n_split * 8, 128), jnp.float32),
        grid_spec=pltpu.PrefetchScalarGridSpec(
            num_scalar_prefetch=0,
            grid=(n_split, n_inner),
            in_specs=[
                pl.BlockSpec((tb, C), lambda p, i: (p * n_inner + i, 0)),
                pl.BlockSpec((tb, C), lambda p, i: (p * n_inner + i, 0)),
                pl.BlockSpec((1, C), lambda p, i: (0, 0)),
                pl.BlockSpec((1, C), lambda p, i: (0, 0)),
            ],
            out_specs=pl.BlockSpec((8, 128), lambda p, i: (p, 0)),
        ),
        compiler_params=pltpu.CompilerParams(
            dimension_semantics=("parallel", "arbitrary"),
            vmem_limit_bytes=int(vmem_limit),
        ),
    )(x, y, w2d, g2d)

    # single final reduce of the tiny lane-dense partials (plain XLA)
    return -jnp.sum(out)


# ----- pure-JAX reference (for correctness check) ----------------------------
def _reference(x, y, weight):
    x = x.astype(jnp.float32)
    y = y.astype(jnp.float32)
    w = weight.astype(jnp.float32)
    xs = jax.nn.sigmoid(x)
    xs_pos = xs
    xs_neg = jnp.minimum(1.0 - xs + CLIP, 1.0)
    los_pos = y * jnp.log(jnp.maximum(xs_pos, EPS))
    los_neg = (1.0 - y) * jnp.log(jnp.maximum(xs_neg, EPS))
    loss = (los_pos + los_neg) * w
    pt = xs_pos * y + xs_neg * (1.0 - y)
    gamma = GAMMA_POS * y + (GAMMA_NEG + w) * (1.0 - y)
    loss = loss * jnp.power(1.0 - pt, gamma)
    return -loss.sum()


if __name__ == "__main__":
    key = jax.random.PRNGKey(0)

    # deterministic synthetic class-frequency distribution (create_weight input)
    C = 128
    distribution = jnp.arange(1, C + 1, dtype=jnp.float32)
    weight = create_weight(distribution)

    k1, k2, k3, k4, k5, k6 = jax.random.split(key, 6)

    # case 1: small problem, auto tiling -> split across both cores (tb=8 x 2)
    B1 = 16
    x1 = jax.random.normal(k1, (B1, C), dtype=jnp.float32) * 2.0
    y1 = (jax.random.uniform(k2, (B1, C)) < 0.2).astype(jnp.float32)
    out1 = jax.block_until_ready(multi_grained_focal_loss(x1, y1, weight))
    ref1 = _reference(x1, y1, weight)
    assert jnp.allclose(out1, ref1, rtol=1e-4, atol=1e-3), (out1, ref1)

    # case 2: multi-tile accumulation + explicit tile_b (2 splits x 2 inner)
    B2 = 64
    x2 = jax.random.normal(k3, (B2, C), dtype=jnp.float32) * 2.0
    y2 = (jax.random.uniform(k4, (B2, C)) < 0.2).astype(jnp.float32)
    out2 = jax.block_until_ready(
        multi_grained_focal_loss(x2, y2, weight, tile_b=16))
    ref2 = _reference(x2, y2, weight)
    assert jnp.allclose(out2, ref2, rtol=1e-4, atol=1e-3), (out2, ref2)

    # case 3: ragged batch (B % 8 != 0) -> padded rows masked inside the kernel
    B3 = 12
    x3 = jax.random.normal(k5, (B3, C), dtype=jnp.float32) * 2.0
    y3 = (jax.random.uniform(k6, (B3, C)) < 0.2).astype(jnp.float32)
    out3 = jax.block_until_ready(multi_grained_focal_loss(x3, y3, weight))
    ref3 = _reference(x3, y3, weight)
    assert jnp.allclose(out3, ref3, rtol=1e-4, atol=1e-3), (out3, ref3)

    print("KERNEL_OK")
</pallas_src>

<mosaic_0001>
module attributes {stable_mosaic.version = 11 : i64} {
  func.func @_mfl_kernel(%arg0: i32, %arg1: i32, %arg2: memref<8x128xf32, #tpu.memory_space<vmem>>, %arg3: memref<8x128xf32, #tpu.memory_space<vmem>>, %arg4: memref<1x128xf32, #tpu.memory_space<vmem>>, %arg5: memref<1x128xf32, #tpu.memory_space<vmem>>, %arg6: memref<8x128xf32, #tpu.memory_space<vmem>>) attributes {dimension_semantics = [#tpu.dimension_semantics<parallel>, #tpu.dimension_semantics<arbitrary>], iteration_bounds = array<i64: 2, 1>, scalar_prefetch = 0 : i64, scratch_operands = 0 : i64, tpu.core_type = #tpu.core_type<tc>, window_params = [{transform_indices = @transform_0, window_bounds = array<i64: 8, 128>}, {transform_indices = @transform_1, window_bounds = array<i64: 8, 128>}, {pipeline_mode = #tpu.pipeline_mode<synchronous>, transform_indices = @transform_2, window_bounds = array<i64: 1, 128>}, {pipeline_mode = #tpu.pipeline_mode<synchronous>, transform_indices = @transform_3, window_bounds = array<i64: 1, 128>}, {transform_indices = @transform_4, window_bounds = array<i64: 8, 128>}]} {
    %c0_i32 = arith.constant 0 : i32
    %0 = arith.cmpi eq, %arg1, %c0_i32 : i32
    %1 = arith.extui %0 : i1 to i32
    %c0_i32_0 = arith.constant 0 : i32
    %2 = arith.cmpi ne, %1, %c0_i32_0 : i32
    scf.if %2 {
      %cst_25 = arith.constant 0.000000e+00 : f32
      %55 = vector.broadcast %cst_25 : f32 to vector<8x128xf32>
      %c0_26 = arith.constant 0 : index
      %c0_27 = arith.constant 0 : index
      %56 = vector.load %arg6[%c0_26, %c0_27] : memref<8x128xf32, #tpu.memory_space<vmem>>, vector<8x128xf32>
      tpu.vector_store %arg6[%c0_26, %c0_27], %55 {strides = array<i32>} : memref<8x128xf32, #tpu.memory_space<vmem>>, vector<8x128xf32>,
    } else {
    }
    %c0 = arith.constant 0 : index
    %c0_1 = arith.constant 0 : index
    %3 = vector.load %arg2[%c0, %c0_1] : memref<8x128xf32, #tpu.memory_space<vmem>>, vector<8x128xf32>
    %c0_2 = arith.constant 0 : index
    %c0_3 = arith.constant 0 : index
    %4 = vector.load %arg3[%c0_2, %c0_3] : memref<8x128xf32, #tpu.memory_space<vmem>>, vector<8x128xf32>
    %c0_4 = arith.constant 0 : index
    %c0_5 = arith.constant 0 : index
    %5 = vector.load %arg4[%c0_4, %c0_5] : memref<1x128xf32, #tpu.memory_space<vmem>>, vector<1x128xf32>
    %c0_6 = arith.constant 0 : index
    %c0_7 = arith.constant 0 : index
    %6 = vector.load %arg5[%c0_6, %c0_7] : memref<1x128xf32, #tpu.memory_space<vmem>>, vector<1x128xf32>
    %cst = arith.constant 5.000000e-01 : f32
    %7 = vector.broadcast %cst : f32 to vector<8x128xf32>
    %8 = arith.mulf %7, %3 : vector<8x128xf32>
    %9 = math.tanh %8 : vector<8x128xf32>
    %cst_8 = arith.constant 1.000000e+00 : f32
    %10 = vector.broadcast %cst_8 : f32 to vector<8x128xf32>
    %11 = arith.addf %9, %10 : vector<8x128xf32>
    %cst_9 = arith.constant 5.000000e-01 : f32
    %12 = vector.broadcast %cst_9 : f32 to vector<8x128xf32>
    %13 = arith.mulf %12, %11 : vector<8x128xf32>
    %cst_10 = arith.constant 1.000000e+00 : f32
    %14 = vector.broadcast %cst_10 : f32 to vector<8x128xf32>
    %15 = arith.subf %14, %13 : vector<8x128xf32>
    %cst_11 = arith.constant 5.000000e-02 : f32
    %16 = vector.broadcast %cst_11 : f32 to vector<8x128xf32>
    %17 = arith.addf %15, %16 : vector<8x128xf32>
    %cst_12 = arith.constant 1.000000e+00 : f32
    %18 = vector.broadcast %cst_12 : f32 to vector<8x128xf32>
    %19 = arith.minimumf %17, %18 : vector<8x128xf32>
    %cst_13 = arith.constant 9.99999993E-9 : f32
    %20 = vector.broadcast %cst_13 : f32 to vector<8x128xf32>
    %21 = arith.maximumf %13, %20 : vector<8x128xf32>
    %22 = math.log %21 : vector<8x128xf32>
    %23 = arith.mulf %4, %22 : vector<8x128xf32>
    %cst_14 = arith.constant 1.000000e+00 : f32
    %24 = vector.broadcast %cst_14 : f32 to vector<8x128xf32>
    %25 = arith.subf %24, %4 : vector<8x128xf32>
    %cst_15 = arith.constant 9.99999993E-9 : f32
    %26 = vector.broadcast %cst_15 : f32 to vector<8x128xf32>
    %27 = arith.maximumf %19, %26 : vector<8x128xf32>
    %28 = math.log %27 : vector<8x128xf32>
    %29 = arith.mulf %25, %28 : vector<8x128xf32>
    %30 = arith.addf %23, %29 : vector<8x128xf32>
    %31 = vector.broadcast %5 : vector<1x128xf32> to vector<8x128xf32>
    %32 = arith.mulf %30, %31 : vector<8x128xf32>
    %33 = arith.mulf %13, %4 : vector<8x128xf32>
    %cst_16 = arith.constant 1.000000e+00 : f32
    %34 = vector.broadcast %cst_16 : f32 to vector<8x128xf32>
    %35 = arith.subf %34, %4 : vector<8x128xf32>
    %36 = arith.mulf %19, %35 : vector<8x128xf32>
    %37 = arith.addf %33, %36 : vector<8x128xf32>
    %cst_17 = arith.constant 1.000000e+00 : f32
    %38 = vector.broadcast %cst_17 : f32 to vector<8x128xf32>
    %39 = arith.subf %38, %4 : vector<8x128xf32>
    %40 = vector.broadcast %6 : vector<1x128xf32> to vector<8x128xf32>
    %41 = arith.mulf %40, %39 : vector<8x128xf32>
    %cst_18 = arith.constant 1.000000e+00 : f32
    %42 = vector.broadcast %cst_18 : f32 to vector<8x128xf32>
    %43 = arith.subf %42, %37 : vector<8x128xf32>
    %cst_19 = arith.constant 9.99999993E-9 : f32
    %44 = vector.broadcast %cst_19 : f32 to vector<8x128xf32>
    %45 = arith.maximumf %43, %44 : vector<8x128xf32>
    %46 = math.log %45 : vector<8x128xf32>
    %47 = arith.mulf %41, %46 : vector<8x128xf32>
    %48 = math.exp %47 : vector<8x128xf32>
    %49 = arith.mulf %32, %48 : vector<8x128xf32>
    %50 = vector.shape_cast %49 : vector<8x128xf32> to vector<1x8x128xf32>
    %cst_20 = arith.constant dense<0.000000e+00> : vector<8x128xf32>
    %51 = vector.multi_reduction <add>, %50, %cst_20 [0] : vector<1x8x128xf32> to vector<8x128xf32>
    %c0_21 = arith.constant 0 : index
    %c0_22 = arith.constant 0 : index
    %52 = vector.load %arg6[%c0_21, %c0_22] : memref<8x128xf32, #tpu.memory_space<vmem>>, vector<8x128xf32>
    %53 = arith.addf %52, %51 : vector<8x128xf32>
    %c0_23 = arith.constant 0 : index
    %c0_24 = arith.constant 0 : index
    %54 = vector.load %arg6[%c0_23, %c0_24] : memref<8x128xf32, #tpu.memory_space<vmem>>, vector<8x128xf32>
    tpu.vector_store %arg6[%c0_23, %c0_24], %53 {strides = array<i32>} : memref<8x128xf32, #tpu.memory_space<vmem>>, vector<8x128xf32>,
    return
  }
  func.func @transform_0(%arg0: i32, %arg1: i32) -> (i32, i32) {
    %c1_i32 = arith.constant 1 : i32
    %0 = arith.muli %arg0, %c1_i32 : i32
    %1 = arith.addi %0, %arg1 : i32
    %c0_i32 = arith.constant 0 : i32
    %c0_i32_0 = arith.constant 0 : i32
    return %1, %c0_i32 : i32, i32
  }
  func.func @transform_1(%arg0: i32, %arg1: i32) -> (i32, i32) {
    %c1_i32 = arith.constant 1 : i32
    %0 = arith.muli %arg0, %c1_i32 : i32
    %1 = arith.addi %0, %arg1 : i32
    %c0_i32 = arith.constant 0 : i32
    %c0_i32_0 = arith.constant 0 : i32
    return %1, %c0_i32 : i32, i32
  }
  func.func @transform_2(%arg0: i32, %arg1: i32) -> (i32, i32) {
    %c0_i32 = arith.constant 0 : i32
    %c0_i32_0 = arith.constant 0 : i32
    %c0_i32_1 = arith.constant 0 : i32
    return %c0_i32, %c0_i32_0 : i32, i32
  }
  func.func @transform_3(%arg0: i32, %arg1: i32) -> (i32, i32) {
    %c0_i32 = arith.constant 0 : i32
    %c0_i32_0 = arith.constant 0 : i32
    %c0_i32_1 = arith.constant 0 : i32
    return %c0_i32, %c0_i32_0 : i32, i32
  }
  func.func @transform_4(%arg0: i32, %arg1: i32) -> (i32, i32) {
    %c0_i32 = arith.constant 0 : i32
    %c0_i32_0 = arith.constant 0 : i32
    return %arg0, %c0_i32 : i32, i32
  }
}

</mosaic_0001>

<llo_original>
// kernel: multi_grained_focal_loss.1
$region0: #{multi_grained_focal_loss.1}
  #allocation0 [shape = 'u32[]', space=smem, size = 0x4, offset = 0x4, fixed_abs, tag = 'smem constant byte address 0x4 - core index']
  #allocation1 [shape = 'u32[144,128]{1,0:T(1,128)}', space=vmem, size = 0x12000, scoped, tag = 'internal scratch']
  %s0 = inlined_call_operand.hbm [shape: f32[16,128], index: 0, kind: input, shape index: {}]
  %s1 = inlined_call_operand.hbm [shape: f32[16,128], index: 1, kind: input, shape index: {}]
  %s2 = inlined_call_operand.vmem [shape: f32[1,128], index: 2, kind: input, shape index: {}]
  %s3 = inlined_call_operand.vmem [shape: f32[1,128], index: 3, kind: input, shape index: {}]
  %s4 = inlined_call_operand.vmem [shape: f32[16,128], index: 4, kind: output, shape index: {}]
  %s5 = sld [smem:[#allocation0]]
  $region61: #{multi_grained_focal_loss.1} parent=0
    _
  %s7 = ssub.s32 1, %s5
  %s8 = scalar_select 0, %s7, %s5
  $region1: #{multi_grained_focal_loss.1} parent=0
    #allocation2 [shape = 'u8[8192]{0}', space=vmem, size = 0x2000, scoped, tag = 'input window, operand 0']
    #allocation3 [shape = 's32[2]{0}', space=sflag, size = 0x8, scoped, tag = 'scoped memory for multi_grained_focal_loss.1']
    #allocation4 [shape = 'u8[8192]{0}', space=vmem, size = 0x2000, scoped, tag = 'input window, operand 1']
    #allocation5 [shape = 's32[2]{0}', space=sflag, size = 0x8, scoped, tag = 'scoped memory for multi_grained_focal_loss.1']
    %9 = vsyncpa [#allocation3], 0
    %s10 = scalar_lea.sflag [#allocation3], 1
    %11 = vsyncpa %s10, 0
    %12 = vsyncpa [#allocation5], 0
    %s13 = scalar_lea.sflag [#allocation5], 1
    %14 = vsyncpa %s13, 0
    loop: start=0, step=1, limit=4
    $region2: #{multi_grained_focal_loss.1} parent=1 // loop_pre_header
      _
    $region3: #{multi_grained_focal_loss.1} parent=1 // loop_header
      %s16 = sphi 0, %s20
      %p17 = scmp.ge.s32.totalorder %s16, 4
      %s23 = sphi 0, %s35
      %s24 = sphi 0, %s31
      %s25 = sphi 0, %s23
      %s26 = sphi 0, %s24
      %s27 = sphi 0, %s25
      %s28 = sphi 0, %s26
      %s40 = sphi 0, %s42
      %s43 = sphi 0, %s40
      %s44 = sphi 0, %s43
      %s60 = sphi 0, %s44
      %s68 = sphi 0, %s70
      %s71 = sphi 0, %s68
      %s72 = sphi 0, %s71
      %s88 = sphi 0, %s72
      %s92 = sphi 0, %s92
      %s94 = sphi 0, %s92
      %s95 = sphi 0, %s94
      %s109 = sphi 0, %s95
      %s113 = sphi 0, %s113
      %s115 = sphi 0, %s113
      %s116 = sphi 0, %s115
      %s130 = sphi 0, %s116
      %s136 = sphi 0, %s138
      %s139 = sphi 0, %s136
      %s140 = sphi 0, %s139
      %s156 = sphi 0, %s140
    $region4: #{multi_grained_focal_loss.1} parent=1 // loop_header_branch
      %19 = sbr.rel (%p17) target = $region8
    $region5: #{multi_grained_focal_loss.1} parent=1 // loop_body
      %s21 = ssub.s32 %s16, 1
      %s22 = ssub.s32 %s16, 2
      %s29 = sadd.s32 1, %s24
      %p30 = scmp.ge.s32.totalorder %s29, 1
      %s31 = scalar_select %p30, 0, %s29
      %s32 = sadd.s32 1, %s23
      %s33 = scalar_select %p30, %s32, %s23
      %p34 = scmp.ge.s32.totalorder %s33, 2
      %s35 = scalar_select %p34, 0, %s33
      %s36 = sadd.s32 %s23, %s24
      %s37 = sadd.s32 %s35, %s31
      %s38 = ssub.s32 %s36, %s37
      %p39 = scmp.eq.s32.totalorder %s38, 0
      %s41 = sadd.s32 %s40, 1
      %s42 = scalar_select %p39, %s40, %s41
      %p45 = pneg %p39
      %p46 = scmp.eq.s32.totalorder %s16, 1
      %p47 = por %p45, %p46
      %p48 = scmp.ne.s32.totalorder %s40, %s43
      %p49 = scmp.eq.s32.totalorder %s16, 0
      %p50 = por %p48, %p49
      %p51 = scmp.ne.s32.totalorder %s40, %s43
      %p52 = scmp.eq.s32.totalorder %s21, 1
      %p53 = por %p51, %p52
      %p54 = scmp.ne.s32.totalorder %s43, %s44
      %p55 = scmp.eq.s32.totalorder %s21, 0
      %p56 = por %p54, %p55
      %p57 = scmp.ne.s32.totalorder %s43, %s44
      %p58 = scmp.eq.s32.totalorder %s22, 1
      %p59 = por %p57, %p58
      %p61 = scmp.ne.s32.totalorder %s44, %s60
      %p62 = scmp.eq.s32.totalorder %s22, 0
      %p63 = por %p61, %p62
      %s64 = sadd.s32 %s23, %s24
      %s65 = sadd.s32 %s35, %s31
      %s66 = ssub.s32 %s64, %s65
      %p67 = scmp.eq.s32.totalorder %s66, 0
      %s69 = sadd.s32 %s68, 1
      %s70 = scalar_select %p67, %s68, %s69
      %p73 = pneg %p67
      %p74 = scmp.eq.s32.totalorder %s16, 1
      %p75 = por %p73, %p74
      %p76 = scmp.ne.s32.totalorder %s68, %s71
      %p77 = scmp.eq.s32.totalorder %s16, 0
      %p78 = por %p76, %p77
      %p79 = scmp.ne.s32.totalorder %s68, %s71
      %p80 = scmp.eq.s32.totalorder %s21, 1
      %p81 = por %p79, %p80
      %p82 = scmp.ne.s32.totalorder %s71, %s72
      %p83 = scmp.eq.s32.totalorder %s21, 0
      %p84 = por %p82, %p83
      %p85 = scmp.ne.s32.totalorder %s71, %s72
      %p86 = scmp.eq.s32.totalorder %s22, 1
      %p87 = por %p85, %p86
      %p89 = scmp.ne.s32.totalorder %s72, %s88
      %p90 = scmp.eq.s32.totalorder %s22, 0
      %p91 = por %p89, %p90
      %s93 = sadd.s32 %s92, 1
      %p96 = scmp.eq.s32.totalorder %s16, 1
      %p97 = scmp.ne.s32.totalorder %s92, %s94
      %p98 = scmp.eq.s32.totalorder %s16, 0
      %p99 = por %p97, %p98
      %p100 = scmp.ne.s32.totalorder %s92, %s94
      %p101 = scmp.eq.s32.totalorder %s21, 1
      %p102 = por %p100, %p101
      %p103 = scmp.ne.s32.totalorder %s94, %s95
      %p104 = scmp.eq.s32.totalorder %s21, 0
      %p105 = por %p103, %p104
      %p106 = scmp.ne.s32.totalorder %s94, %s95
      %p107 = scmp.eq.s32.totalorder %s22, 1
      %p108 = por %p106, %p107
      %p110 = scmp.ne.s32.totalorder %s95, %s109
      %p111 = scmp.eq.s32.totalorder %s22, 0
      %p112 = por %p110, %p111
      %s114 = sadd.s32 %s113, 1
      %p117 = scmp.eq.s32.totalorder %s16, 1
      %p118 = scmp.ne.s32.totalorder %s113, %s115
      %p119 = scmp.eq.s32.totalorder %s16, 0
      %p120 = por %p118, %p119
      %p121 = scmp.ne.s32.totalorder %s113, %s115
      %p122 = scmp.eq.s32.totalorder %s21, 1
      %p123 = por %p121, %p122
      %p124 = scmp.ne.s32.totalorder %s115, %s116
      %p125 = scmp.eq.s32.totalorder %s21, 0
      %p126 = por %p124, %p125
      %p127 = scmp.ne.s32.totalorder %s115, %s116
      %p128 = scmp.eq.s32.totalorder %s22, 1
      %p129 = por %p127, %p128
      %p131 = scmp.ne.s32.totalorder %s116, %s130
      %p132 = scmp.eq.s32.totalorder %s22, 0
      %p133 = por %p131, %p132
      %s134 = ssub.s32 %s23, %s35
      %p135 = scmp.eq.s32.totalorder %s134, 0
      %s137 = sadd.s32 %s136, 1
      %s138 = scalar_select %p135, %s136, %s137
      %p141 = pneg %p135
      %p142 = scmp.eq.s32.totalorder %s16, 1
      %p143 = por %p141, %p142
      %p144 = scmp.ne.s32.totalorder %s136, %s139
      %p145 = scmp.eq.s32.totalorder %s16, 0
      %p146 = por %p144, %p145
      %p147 = scmp.ne.s32.totalorder %s136, %s139
      %p148 = scmp.eq.s32.totalorder %s21, 1
      %p149 = por %p147, %p148
      %p150 = scmp.ne.s32.totalorder %s139, %s140
      %p151 = scmp.eq.s32.totalorder %s21, 0
      %p152 = por %p150, %p151
      %p153 = scmp.ne.s32.totalorder %s139, %s140
      %p154 = scmp.eq.s32.totalorder %s22, 1
      %p155 = por %p153, %p154
      %p157 = scmp.ne.s32.totalorder %s140, %s156
      %p158 = scmp.eq.s32.totalorder %s22, 0
      %p159 = por %p157, %p158
      %p160 = scmp.le.s32.totalorder 1, %s16
      %p161 = scmp.lt.s32.totalorder %s16, 3
      %p162 = pnand %p160, %p161
      %p163 = pneg %p162
      // Predicated region
      $region9: #{multi_grained_focal_loss.1} parent=5 // pred_check
        _
      $region10: #{multi_grained_focal_loss.1} parent=5 // pred_check_branch
        %165 = sbr.rel (%p162) target = $region12
      $region11: #{multi_grained_focal_loss.1} parent=5 // pred_region
        %s166 = ssub.s32 %s16, 1
        // Predicated region
        $region13: #{multi_grained_focal_loss.1} parent=11 // pred_check
          %p167 = pneg %p105
        $region14: #{multi_grained_focal_loss.1} parent=11 // pred_check_branch
          %169 = sbr.rel (%p167) target = $region16
        $region15: #{multi_grained_focal_loss.1} parent=11 // pred_region
          _
        $region16: #{multi_grained_focal_loss.1} parent=11 // pred_fallthru
          _
        // Predicated region
        $region17: #{multi_grained_focal_loss.1} parent=11 // pred_check
          %p170 = pneg %p126
        $region18: #{multi_grained_focal_loss.1} parent=11 // pred_check_branch
          %172 = sbr.rel (%p170) target = $region20
        $region19: #{multi_grained_focal_loss.1} parent=11 // pred_region
          _
        $region20: #{multi_grained_focal_loss.1} parent=11 // pred_fallthru
          _
      $region12: #{multi_grained_focal_loss.1} parent=5 // pred_fallthru
        _
      %p173 = scmp.lt.s32.totalorder %s16, 2
      // Predicated region
      $region21: #{multi_grained_focal_loss.1} parent=5 // pred_check
        %p174 = pneg %p173
      $region22: #{multi_grained_focal_loss.1} parent=5 // pred_check_branch
        %176 = sbr.rel (%p174) target = $region24
      $region23: #{multi_grained_focal_loss.1} parent=5 // pred_region
        // Predicated region
        $region25: #{multi_grained_focal_loss.1} parent=23 // pred_check
          %p177 = pneg %p50
        $region26: #{multi_grained_focal_loss.1} parent=23 // pred_check_branch
          %179 = sbr.rel (%p177) target = $region28
        $region27: #{multi_grained_focal_loss.1} parent=23 // pred_region
          %s180 = sand.u32 %s40, 1
          %s181 = scalar_lea.sflag [#allocation3], %s180
          %s182 = sand.u32 %s40, 1
          %s183 = smul.addr %s182, 8
          %s184 = scalar_lea.vmem [#allocation2], %s183
          %s185 = sadd.s32 %s23, %s24
          %s187 = ssub.s32 128, 128
          %188 = vsyncadd %s181, %s187
          %s189 = smul.addr %s185, 128
          %s190 = scalar_lea.hbm %s0, %s189
          %s192 = sshll.u32 %s184, 4
          %s193 = int_to_ptr.vmem [resolvable:$true] %s192
          %195 = dma.hbm_to_vmem [thread:$0]  %s190, 128, %s193, %s181
        $region28: #{multi_grained_focal_loss.1} parent=23 // pred_fallthru
          _
        // Predicated region
        $region29: #{multi_grained_focal_loss.1} parent=23 // pred_check
          %p196 = pneg %p78
        $region30: #{multi_grained_focal_loss.1} parent=23 // pred_check_branch
          %198 = sbr.rel (%p196) target = $region32
        $region31: #{multi_grained_focal_loss.1} parent=23 // pred_region
          %s199 = sand.u32 %s68, 1
          %s200 = scalar_lea.sflag [#allocation5], %s199
          %s201 = sand.u32 %s68, 1
          %s202 = smul.addr %s201, 8
          %s203 = scalar_lea.vmem [#allocation4], %s202
          %s204 = sadd.s32 %s23, %s24
          %s206 = ssub.s32 128, 128
          %207 = vsyncadd %s200, %s206
          %s208 = smul.addr %s204, 128
          %s209 = scalar_lea.hbm %s1, %s208
          %s211 = sshll.u32 %s203, 4
          %s212 = int_to_ptr.vmem [resolvable:$true] %s211
          %214 = dma.hbm_to_vmem [thread:$0]  %s209, 128, %s212, %s200
        $region32: #{multi_grained_focal_loss.1} parent=23 // pred_fallthru
          _
      $region24: #{multi_grained_focal_loss.1} parent=5 // pred_fallthru
        _
      %p215 = scmp.le.s32.totalorder 1, %s16
      %p216 = scmp.lt.s32.totalorder %s16, 3
      %p217 = pnand %p215, %p216
      %p218 = pneg %p217
      // Predicated region
      $region33: #{multi_grained_focal_loss.1} parent=5 // pred_check
        _
      $region34: #{multi_grained_focal_loss.1} parent=5 // pred_check_branch
        %220 = sbr.rel (%p217) target = $region36
      $region35: #{multi_grained_focal_loss.1} parent=5 // pred_region
        %s221 = ssub.s32 %s16, 1
        %s222 = sand.u32 %s43, 1
        %s223 = scalar_lea.sflag [#allocation3], %s222
        %s224 = sand.u32 %s43, 1
        %s225 = smul.addr %s224, 8
        %s226 = scalar_lea.vmem [#allocation2], %s225
        // Predicated region
        $region37: #{multi_grained_focal_loss.1} parent=35 // pred_check
          %p227 = pneg %p56
        $region38: #{multi_grained_focal_loss.1} parent=35 // pred_check_branch
          %229 = sbr.rel (%p227) target = $region40
        $region39: #{multi_grained_focal_loss.1} parent=35 // pred_region
          %230 = dma.done %s223, 128
        $region40: #{multi_grained_focal_loss.1} parent=35 // pred_fallthru
          _
        %s231 = sand.u32 %s71, 1
        %s232 = scalar_lea.sflag [#allocation5], %s231
        %s233 = sand.u32 %s71, 1
        %s234 = smul.addr %s233, 8
        %s235 = scalar_lea.vmem [#allocation4], %s234
        // Predicated region
        $region41: #{multi_grained_focal_loss.1} parent=35 // pred_check
          %p236 = pneg %p84
        $region42: #{multi_grained_focal_loss.1} parent=35 // pred_check_branch
          %238 = sbr.rel (%p236) target = $region44
        $region43: #{multi_grained_focal_loss.1} parent=35 // pred_region
          %239 = dma.done %s232, 128
        $region44: #{multi_grained_focal_loss.1} parent=35 // pred_fallthru
          _
        %s240 = sand.u32 %s43, 1
        %s241 = scalar_lea.sflag [#allocation3], %s240
        %s242 = sand.u32 %s43, 1
        %s243 = smul.addr %s242, 8
        %s244 = scalar_lea.vmem [#allocation2], %s243
        %p245 = pneg %p56
        %p246 = pneg %p53
        %s247 = sand.u32 %s71, 1
        %s248 = scalar_lea.sflag [#allocation5], %s247
        %s249 = sand.u32 %s71, 1
        %s250 = smul.addr %s249, 8
        %s251 = scalar_lea.vmem [#allocation4], %s250
        %p252 = pneg %p84
        %p253 = pneg %p81
        %p254 = pneg %p105
        %p255 = pneg %p102
        %p256 = pneg %p126
        %p257 = pneg %p123
        %p258 = pneg %p152
        %p259 = pneg %p149
        %p260 = scmp.lt.s32.totalorder %s25, 1
        %s261 = scalar_select %p260, %s25, 1
        %s262 = smul.addr %s261, 8
        %s263 = scalar_lea.vmem %s4, %s262
        %s264 = sadd.s32 %s25, %s26
        %s265 = sadd.s32 %s25, %s26
        %p266 = scmp.lt.s32.totalorder %s25, 1
        %s267 = scalar_select %p266, %s25, 1
        %s268 = smul.addr %s267, 8
        %s269 = scalar_lea.vmem %s4, %s268
        %p270 = scmp.eq.s32.totalorder %s26, 0
        // Predicated region
        $region45: #{multi_grained_focal_loss.1} parent=35 // pred_check
          %p271 = pneg %p270
        $region46: #{multi_grained_focal_loss.1} parent=35 // pred_check_branch
          %273 = sbr.rel (%p271) target = $region48
        $region47: #{multi_grained_focal_loss.1} parent=35 // pred_region
          %274 = vst [vmem:[%s269] sm:$0xff] 0.0
        $region48: #{multi_grained_focal_loss.1} parent=35 // pred_fallthru
          _
        %v275 = vld [vmem:[%s226] sm:$0xff]
        %v276 = vld [vmem:[%s235] sm:$0xff]
        %v277 = vld [vmem:[%s2] sm:$0x1]
        %v278 = vld [vmem:[%s3] sm:$0x1]
        %v279 = vmul.f32 %v275, 0.5
        %v280 = vtanh.pop %v279
        %v281 = vadd.f32 %v280, 1.0
        %v282 = vmul.f32 %v281, 0.5
        %v283 = vsub.f32 1.0, %v282
        %v284 = vadd.f32 %v283, 0.05
        %v285 = vmin.f32 %v284, 1.0
        %v286 = vmax.f32 %v282, 1e-08
        %v287 = vlog2.pop %v286
        %v288 = vmul.f32 %v287, 0.6931472
        %v289 = vmul.f32 %v276, %v288
        %v290 = vsub.f32 1.0, %v276
        %v291 = vmax.f32 %v285, 1e-08
        %v292 = vlog2.pop %v291
        %v293 = vmul.f32 %v292, 0.6931472
        %v294 = vmul.f32 %v290, %v293
        %v295 = vadd.f32 %v289, %v294
        %v297 = vlaneseq
        %v298 = vshrl.u32 %v297, 7
        %v299 = vsub.s32 0, %v298
        %v300 = vrot.slane %v277, %v299
        %v302 = vmul.f32 %v295, %v300
        %v303 = vmul.f32 %v282, %v276
        %v304 = vmul.f32 %v285, %v290
        %v305 = vadd.f32 %v303, %v304
        %v307 = vlaneseq
        %v308 = vshrl.u32 %v307, 7
        %v309 = vsub.s32 0, %v308
        %v310 = vrot.slane %v278, %v309
        %v312 = vmul.f32 %v310, %v290
        %v313 = vsub.f32 1.0, %v305
        %v314 = vmax.f32 %v313, 1e-08
        %v315 = vlog2.pop %v314
        %v316 = vmul.f32 %v315, 0.6931472
        %v317 = vmul.f32 %v312, %v316
        %v318 = vmul.f32 %v317, 1.442695
        %v319 = vpow.pop %v318
        %v320 = vmul.f32 %v302, %v319
        %v321 = vadd.f32 %v320, 0.0
        %v322 = vld [vmem:[%s269] sm:$0xff]
        %v323 = vadd.f32 %v322, %v321
        %324 = vst [vmem:[%s269] sm:$0xff] %v323
        %p325 = scmp.lt.s32.totalorder %s25, 1
        %s326 = scalar_select %p325, %s25, 1
        %s327 = smul.addr %s326, 8
        %s328 = scalar_lea.vmem %s4, %s327
        // Predicated region
        $region49: #{multi_grained_focal_loss.1} parent=35 // pred_check
          %p329 = pneg %p149
        $region50: #{multi_grained_focal_loss.1} parent=35 // pred_check_branch
          %331 = sbr.rel (%p329) target = $region52
        $region51: #{multi_grained_focal_loss.1} parent=35 // pred_region
          _
        $region52: #{multi_grained_focal_loss.1} parent=35 // pred_fallthru
          _
      $region36: #{multi_grained_focal_loss.1} parent=5 // pred_fallthru
        _
      %p332 = scmp.le.s32.totalorder 2, %s16
      // Predicated region
      $region53: #{multi_grained_focal_loss.1} parent=5 // pred_check
        %p333 = pneg %p332
      $region54: #{multi_grained_focal_loss.1} parent=5 // pred_check_branch
        %335 = sbr.rel (%p333) target = $region56
      $region55: #{multi_grained_focal_loss.1} parent=5 // pred_region
        %s336 = ssub.s32 %s16, 2
        // Predicated region
        $region57: #{multi_grained_focal_loss.1} parent=55 // pred_check
          %p337 = pneg %p155
        $region58: #{multi_grained_focal_loss.1} parent=55 // pred_check_branch
          %339 = sbr.rel (%p337) target = $region60
        $region59: #{multi_grained_focal_loss.1} parent=55 // pred_region
          %p340 = scmp.lt.s32.totalorder %s27, 1
          %s341 = scalar_select %p340, %s27, 1
          %s342 = smul.addr %s341, 8
          %s343 = scalar_lea.vmem %s4, %s342
        $region60: #{multi_grained_focal_loss.1} parent=55 // pred_fallthru
          _
      $region56: #{multi_grained_focal_loss.1} parent=5 // pred_fallthru
        _
    $region6: #{multi_grained_focal_loss.1} parent=1 // loop_footer
      %s20 = sadd.s32 1, %s16
    $region7: #{multi_grained_focal_loss.1} parent=1 // loop_footer_branch
      %15 = sbr.rel target = $region3
    $region8: #{multi_grained_focal_loss.1} parent=1 // loop_exit
      _
    %344 = vsyncpa [#allocation3], 1
    %s345 = scalar_lea.sflag [#allocation3], 1
    %346 = vsyncpa %s345, 1
    %347 = vsyncpa [#allocation5], 1
    %s348 = scalar_lea.sflag [#allocation5], 1
    %349 = vsyncpa %s348, 1

</llo_original>
